<compile_context>
chip_gen: v6e
topology: v6e:2x2x1
jax: 0.10.0
libtpu: 0.0.40
codegen_flags: <defaults>
</compile_context>

<pallas_src>
import functools
import math

import jax
import jax.numpy as jnp
from jax import lax
from jax.experimental import pallas as pl
from jax.experimental.pallas import tpu as pltpu


# ------------------------------ Pallas kernel -------------------------------

def _additive_attention_kernel(vl_ref, q_ref, k_ref, v_ref,
                               wq_ref, wk_ref, wv_ref, o_ref,
                               *, sk_chunk, feats_dtype):
    bt, sq_t, dq = q_ref.shape
    _, sk, dk = k_ref.shape
    h = wq_ref.shape[0]

    b0 = pl.program_id(0) * bt          # first batch element handled by this step

    # Batched projections: one MXU pass each with M = bt*sq_t (resp. bt*sk) instead of
    # bt tiny sub-32-row matmuls.  nn.Linear weights are stored (out, in), so contract
    # the LAST dims of both operands (x @ W.T) -- no wrapper-side transpose/relayout.
    dn = (((1,), (1,)), ((), ()))
    qh = lax.dot_general(q_ref[...].reshape(bt * sq_t, dq), wq_ref[...], dn,
                         preferred_element_type=jnp.float32).reshape(bt, sq_t, h)
    kh = lax.dot_general(k_ref[...].reshape(bt * sk, dk), wk_ref[...], dn,
                         preferred_element_type=jnp.float32).reshape(bt, sk, h)
    # TODO(synk): with many Sq tiles, kh is recomputed per tile; it is a tiny FLOP
    # fraction on the otherwise idle MXU, but could be hoisted to a wrapper GEMM.

    wv = wv_ref[...].astype(feats_dtype)          # (1, h)

    # Small static loop over the batch elements of this tile: all indexing stays static.
    for i in range(bt):
        qh_i = qh[i].astype(feats_dtype)          # (sq_t, h)
        kh_i = kh[i].astype(feats_dtype)          # (sk,   h)

        # Build the (sq_t, sk) score matrix in Sk chunks so only a (sq_t, sk_chunk, h)
        # feats slab is live at any time (bounds VMEM/vregs at realistic shapes).
        score_chunks = []
        for s0 in range(0, sk, sk_chunk):
            s1 = min(s0 + sk_chunk, sk)
            feats = jnp.tanh(qh_i[:, None, :] + kh_i[None, s0:s1, :])   # feats_dtype
            prod = (feats * wv).astype(jnp.float32)
            score_chunks.append(jnp.sum(prod, axis=-1))                 # (sq_t, s1-s0) f32
        scores = (score_chunks[0] if len(score_chunks) == 1
                  else jnp.concatenate(score_chunks, axis=-1))          # (sq_t, sk) f32

        # masked_softmax: key positions >= valid_len get -1e6 (d2l convention, so a
        # fully-masked row degrades to a uniform distribution, matching the reference).
        vl = vl_ref[b0 + i]                                             # scalar from SMEM
        kv_idx = lax.broadcasted_iota(jnp.int32, scores.shape, 1)
        scores = jnp.where(kv_idx < vl, scores, jnp.float32(-1e6))

        scores = scores - jnp.max(scores, axis=-1, keepdims=True)
        w = jnp.exp(scores)
        attn = w / jnp.sum(w, axis=-1, keepdims=True)                   # exact normalizer

        # bmm(dropout(attn), values) with dropout == identity (eval mode).
        out_i = jnp.dot(attn.astype(v_ref.dtype), v_ref[i],
                        preferred_element_type=jnp.float32)             # (sq_t, dv)
        o_ref[i] = out_i.astype(o_ref.dtype)


# ----------------------------- tile heuristics --------------------------------

def _pick_sq_tile(sq, max_rows=256):
    """Full Sq if small; otherwise the largest multiple-of-8 divisor <= max_rows."""
    if sq <= max_rows:
        return sq
    best = sq
    for t in range(8, max_rows + 1, 8):
        if sq % t == 0:
            best = t
    return best


def _pick_batch_tile(b, sq_t, target_rows=256):
    """Largest divisor of B so the projection GEMM has ~target_rows rows per step."""
    bt = 1
    for d in range(1, b + 1):
        if b % d == 0 and d * sq_t <= target_rows:
            bt = d
    return bt


def _pick_sk_chunk(sk, sq_t, h, feats_dtype, budget_bytes=2 << 20):
    """Sk chunk so the live feats slab (+ f32 product slab) stays within budget."""
    itemsize = jnp.dtype(feats_dtype).itemsize
    per_key = max(1, sq_t * h * (itemsize + 4))
    chunk = max(8, budget_bytes // per_key)
    return int(min(sk, chunk))


def _preferred_feats_dtype():
    """bf16 tanh-feature path only where the EUP supports packed bf16 (v6e / v7x)."""
    try:
        kind = jax.devices()[0].device_kind.lower()
    except Exception:
        return jnp.float32
    if any(tag in kind for tag in ("v6", "v7", "7x", "trillium")):
        return jnp.bfloat16
    return jnp.float32


# ------------------------------ JAX wrapper ----------------------------------

@functools.partial(jax.jit, static_argnames=("feats_dtype",))
def additive_attention(queries, keys, values, valid_lens, params,
                       *, feats_dtype=jnp.float32):
    B, Sq, Dq = queries.shape
    _, Sk, Dk = keys.shape
    Dv = values.shape[-1]
    W_q, W_k, w_v = params["W_q"], params["W_k"], params["w_v"]
    H = W_q.shape[0]

    vl = valid_lens.astype(jnp.int32)

    sq_t = _pick_sq_tile(Sq)
    bt = _pick_batch_tile(B, sq_t)
    sk_chunk = _pick_sk_chunk(Sk, sq_t, H, feats_dtype)

    kernel = functools.partial(_additive_attention_kernel,
                               sk_chunk=sk_chunk, feats_dtype=feats_dtype)

    flops = (2 * B * (Sq * Dq * H + Sk * Dk * H)          # projections
             + B * Sq * Sk * (3 * H + 8)                  # add + mul + H-reduce + softmax
             + 2 * B * Sq * Sk * Dv)                      # attn @ values
    transcendentals = B * Sq * Sk * (H + 1)               # tanh + exp
    bytes_accessed = 4 * (queries.size + keys.size + values.size
                          + W_q.size + W_k.size + w_v.size + B * Sq * Dv)

    grid_spec = pltpu.PrefetchScalarGridSpec(
        num_scalar_prefetch=1,
        grid=(B // bt, Sq // sq_t),
        in_specs=[
            pl.BlockSpec((bt, sq_t, Dq), lambda b, qi, vl_ref: (b, qi, 0)),
            pl.BlockSpec((bt, Sk, Dk), lambda b, qi, vl_ref: (b, 0, 0)),
            pl.BlockSpec((bt, Sk, Dv), lambda b, qi, vl_ref: (b, 0, 0)),
            pl.BlockSpec((H, Dq), lambda b, qi, vl_ref: (0, 0)),
            pl.BlockSpec((H, Dk), lambda b, qi, vl_ref: (0, 0)),
            pl.BlockSpec((1, H), lambda b, qi, vl_ref: (0, 0)),
        ],
        out_specs=pl.BlockSpec((bt, sq_t, Dv), lambda b, qi, vl_ref: (b, qi, 0)),
    )

    return pl.pallas_call(
        kernel,
        out_shape=jax.ShapeDtypeStruct((B, Sq, Dv), queries.dtype),
        grid_spec=grid_spec,
        compiler_params=pltpu.CompilerParams(
            dimension_semantics=("parallel", "parallel"),
            vmem_limit_bytes=48 * 1024 * 1024,            # budgeted for v7x's 64 MiB VMEM
        ),
        cost_estimate=pl.CostEstimate(flops=flops,
                                      transcendentals=transcendentals,
                                      bytes_accessed=bytes_accessed),
    )(vl, queries, keys, values, W_q, W_k, w_v)


# -------------------------------- reference ----------------------------------

def _reference(queries, keys, values, valid_lens, params):
    qh = jnp.einsum("bqd,hd->bqh", queries, params["W_q"])
    kh = jnp.einsum("bkd,hd->bkh", keys, params["W_k"])
    feats = jnp.tanh(qh[:, :, None, :] + kh[:, None, :, :])
    scores = jnp.einsum("bqkh,h->bqk", feats, params["w_v"][0])
    kv_idx = lax.broadcasted_iota(jnp.int32, scores.shape, 2)
    scores = jnp.where(kv_idx < valid_lens[:, None, None], scores, -1e6)
    attn = jax.nn.softmax(scores, axis=-1)
    return jnp.einsum("bqk,bkd->bqd", attn, values)


# ----------------------------------- main -------------------------------------

if __name__ == "__main__":
    B, Sq, Sk = 2, 8, 8
    Dq, Dk, Dv = 16, 24, 32       # query / key / value feature dims (LazyLinear-inferred)
    H = 32                        # num_hidden

    key = jax.random.PRNGKey(0)
    kq, kk, kv, kwq, kwk, kwv = jax.random.split(key, 6)

    queries = jax.random.normal(kq, (B, Sq, Dq), dtype=jnp.float32)
    keys_in = jax.random.normal(kk, (B, Sk, Dk), dtype=jnp.float32)
    values_in = jax.random.normal(kv, (B, Sk, Dv), dtype=jnp.float32)
    valid_lens = jnp.array([3, 6], dtype=jnp.int32)

    # nn.Linear-style weights: (out_features, in_features), bias=False.
    params = {
        "W_q": jax.random.uniform(kwq, (H, Dq), jnp.float32,
                                  -1.0 / math.sqrt(Dq), 1.0 / math.sqrt(Dq)),
        "W_k": jax.random.uniform(kwk, (H, Dk), jnp.float32,
                                  -1.0 / math.sqrt(Dk), 1.0 / math.sqrt(Dk)),
        "w_v": jax.random.uniform(kwv, (1, H), jnp.float32,
                                  -1.0 / math.sqrt(H), 1.0 / math.sqrt(H)),
    }

    feats_dtype = _preferred_feats_dtype()
    out = additive_attention(queries, keys_in, values_in, valid_lens, params,
                             feats_dtype=feats_dtype)
    out = jax.block_until_ready(out)

    ref = _reference(queries, keys_in, values_in, valid_lens, params)
    assert out.shape == (B, Sq, Dv)
    if feats_dtype == jnp.bfloat16:
        atol, rtol = 3e-2, 5e-2     # bf16 tanh-feature path (v6e / v7x)
    else:
        atol, rtol = 2e-3, 2e-2     # f32 path (v5e and older)
    assert jnp.allclose(out, ref, atol=atol, rtol=rtol), "mismatch vs JAX reference"

    print("KERNEL_OK")
</pallas_src>

<mosaic_0001>
module attributes {stable_mosaic.version = 11 : i64} {
  func.func @_additive_attention_kernel(%arg0: i32, %arg1: i32, %arg2: memref<2xi32, #tpu.memory_space<smem>>, %arg3: memref<2x8x16xf32, #tpu.memory_space<vmem>>, %arg4: memref<2x8x24xf32, #tpu.memory_space<vmem>>, %arg5: memref<2x8x32xf32, #tpu.memory_space<vmem>>, %arg6: memref<32x16xf32, #tpu.memory_space<vmem>>, %arg7: memref<32x24xf32, #tpu.memory_space<vmem>>, %arg8: memref<1x32xf32, #tpu.memory_space<vmem>>, %arg9: memref<2x8x32xf32, #tpu.memory_space<vmem>>) attributes {dimension_semantics = [#tpu.dimension_semantics<parallel>, #tpu.dimension_semantics<parallel>], iteration_bounds = array<i64: 1, 1>, scalar_prefetch = 1 : i64, scratch_operands = 0 : i64, tpu.core_type = #tpu.core_type<tc>, window_params = [{transform_indices = @transform_0, window_bounds = array<i64: 2, 8, 16>}, {transform_indices = @transform_1, window_bounds = array<i64: 2, 8, 24>}, {transform_indices = @transform_2, window_bounds = array<i64: 2, 8, 32>}, {pipeline_mode = #tpu.pipeline_mode<synchronous>, transform_indices = @transform_3, window_bounds = array<i64: 32, 16>}, {pipeline_mode = #tpu.pipeline_mode<synchronous>, transform_indices = @transform_4, window_bounds = array<i64: 32, 24>}, {pipeline_mode = #tpu.pipeline_mode<synchronous>, transform_indices = @transform_5, window_bounds = array<i64: 1, 32>}, {transform_indices = @transform_6, window_bounds = array<i64: 2, 8, 32>}]} {
    %c2_i32 = arith.constant 2 : i32
    %0 = arith.muli %arg0, %c2_i32 : i32
    %c0 = arith.constant 0 : index
    %c0_0 = arith.constant 0 : index
    %c0_1 = arith.constant 0 : index
    %1 = vector.load %arg3[%c0, %c0_0, %c0_1] : memref<2x8x16xf32, #tpu.memory_space<vmem>>, vector<2x8x16xf32>
    %2 = vector.shape_cast %1 : vector<2x8x16xf32> to vector<16x16xf32>
    %c0_2 = arith.constant 0 : index
    %c0_3 = arith.constant 0 : index
    %3 = vector.load %arg6[%c0_2, %c0_3] : memref<32x16xf32, #tpu.memory_space<vmem>>, vector<32x16xf32>
    %cst = arith.constant dense<0.000000e+00> : vector<16x32xf32>
    %4 = tpu.matmul %2, %3, %cst {dimension_numbers = #tpu.dot_dimension_numbers<[1], [1], [0], [0], [0, 0, 1, 0], [], []>} : vector<16x16xf32>, vector<32x16xf32>, vector<16x32xf32> -> vector<16x32xf32>
    %5 = vector.shape_cast %4 : vector<16x32xf32> to vector<2x8x32xf32>
    %c0_4 = arith.constant 0 : index
    %c0_5 = arith.constant 0 : index
    %c0_6 = arith.constant 0 : index
    %6 = vector.load %arg4[%c0_4, %c0_5, %c0_6] : memref<2x8x24xf32, #tpu.memory_space<vmem>>, vector<2x8x24xf32>
    %7 = vector.shape_cast %6 : vector<2x8x24xf32> to vector<16x24xf32>
    %c0_7 = arith.constant 0 : index
    %c0_8 = arith.constant 0 : index
    %8 = vector.load %arg7[%c0_7, %c0_8] : memref<32x24xf32, #tpu.memory_space<vmem>>, vector<32x24xf32>
    %cst_9 = arith.constant dense<0.000000e+00> : vector<16x32xf32>
    %9 = tpu.matmul %7, %8, %cst_9 {dimension_numbers = #tpu.dot_dimension_numbers<[1], [1], [0], [0], [0, 0, 1, 0], [], []>} : vector<16x24xf32>, vector<32x24xf32>, vector<16x32xf32> -> vector<16x32xf32>
    %10 = vector.shape_cast %9 : vector<16x32xf32> to vector<2x8x32xf32>
    %c0_10 = arith.constant 0 : index
    %c0_11 = arith.constant 0 : index
    %11 = vector.load %arg8[%c0_10, %c0_11] : memref<1x32xf32, #tpu.memory_space<vmem>>, vector<1x32xf32>
    %12 = vector.extract_strided_slice %5 {offsets = [0, 0, 0], sizes = [1, 8, 32], strides = [1, 1, 1]} : vector<2x8x32xf32> to vector<1x8x32xf32>
    %13 = vector.shape_cast %12 : vector<1x8x32xf32> to vector<8x32xf32>
    %14 = vector.extract_strided_slice %10 {offsets = [0, 0, 0], sizes = [1, 8, 32], strides = [1, 1, 1]} : vector<2x8x32xf32> to vector<1x8x32xf32>
    %15 = vector.shape_cast %14 : vector<1x8x32xf32> to vector<8x32xf32>
    %16 = vector.shape_cast %13 : vector<8x32xf32> to vector<8x1x32xf32>
    %17 = vector.shape_cast %15 : vector<8x32xf32> to vector<1x8x32xf32>
    %18 = vector.broadcast %16 : vector<8x1x32xf32> to vector<8x8x32xf32>
    %19 = vector.broadcast %17 : vector<1x8x32xf32> to vector<8x8x32xf32>
    %20 = arith.addf %18, %19 : vector<8x8x32xf32>
    %21 = math.tanh %20 : vector<8x8x32xf32>
    %22 = vector.shape_cast %11 : vector<1x32xf32> to vector<1x1x32xf32>
    %23 = vector.broadcast %22 : vector<1x1x32xf32> to vector<8x8x32xf32>
    %24 = arith.mulf %21, %23 : vector<8x8x32xf32>
    %cst_12 = arith.constant dense<0.000000e+00> : vector<8x8xf32>
    %25 = vector.multi_reduction <add>, %24, %cst_12 [2] : vector<8x8x32xf32> to vector<8x8xf32>
    %c0_i32 = arith.constant 0 : i32
    %26 = arith.addi %0, %c0_i32 : i32
    %27 = arith.index_cast %26 : i32 to index
    %28 = memref.load %arg2[%27] : memref<2xi32, #tpu.memory_space<smem>>
    %29 = tpu.iota {dimensions = array<i32: 1>} : vector<8x8xi32>
    %30 = vector.broadcast %28 : i32 to vector<8x8xi32>
    %31 = arith.cmpi slt, %29, %30 : vector<8x8xi32>
    %cst_13 = arith.constant -1.000000e+06 : f32
    %32 = vector.broadcast %cst_13 : f32 to vector<8x8xf32>
    %33 = arith.select %31, %25, %32 : vector<8x8xi1>, vector<8x8xf32>
    %cst_14 = arith.constant dense<0xFF800000> : vector<8xf32>
    %34 = vector.multi_reduction <maximumf>, %33, %cst_14 [1] : vector<8x8xf32> to vector<8xf32>
    %35 = vector.shape_cast %34 : vector<8xf32> to vector<8x1xf32>
    %36 = vector.broadcast %35 : vector<8x1xf32> to vector<8x8xf32>
    %37 = arith.subf %33, %36 : vector<8x8xf32>
    %38 = math.exp %37 : vector<8x8xf32>
    %cst_15 = arith.constant dense<0.000000e+00> : vector<8xf32>
    %39 = vector.multi_reduction <add>, %38, %cst_15 [1] : vector<8x8xf32> to vector<8xf32>
    %40 = vector.shape_cast %39 : vector<8xf32> to vector<8x1xf32>
    %41 = vector.broadcast %40 : vector<8x1xf32> to vector<8x8xf32>
    %42 = arith.divf %38, %41 : vector<8x8xf32>
    %c0_16 = arith.constant 0 : index
    %c0_17 = arith.constant 0 : index
    %c0_18 = arith.constant 0 : index
    %43 = vector.load %arg5[%c0_16, %c0_17, %c0_18] : memref<2x8x32xf32, #tpu.memory_space<vmem>>, vector<1x8x32xf32>
    %44 = vector.shape_cast %43 : vector<1x8x32xf32> to vector<8x32xf32>
    %cst_19 = arith.constant dense<0.000000e+00> : vector<8x32xf32>
    %45 = tpu.matmul %42, %44, %cst_19 {dimension_numbers = #tpu.dot_dimension_numbers<[1], [0], [0], [1], [0, 0, 1, 1], [], []>} : vector<8x8xf32>, vector<8x32xf32>, vector<8x32xf32> -> vector<8x32xf32>
    %c0_20 = arith.constant 0 : index
    %c0_21 = arith.constant 0 : index
    %c0_22 = arith.constant 0 : index
    %46 = vector.load %arg9[%c0_20, %c0_21, %c0_22] : memref<2x8x32xf32, #tpu.memory_space<vmem>>, vector<1x8x32xf32>
    %47 = vector.shape_cast %46 : vector<1x8x32xf32> to vector<8x32xf32>
    %48 = vector.shape_cast %45 : vector<8x32xf32> to vector<1x8x32xf32>
    tpu.vector_store %arg9[%c0_20, %c0_21, %c0_22], %48 {strides = array<i32>} : memref<2x8x32xf32, #tpu.memory_space<vmem>>, vector<1x8x32xf32>,
    %49 = vector.extract_strided_slice %5 {offsets = [1, 0, 0], sizes = [1, 8, 32], strides = [1, 1, 1]} : vector<2x8x32xf32> to vector<1x8x32xf32>
    %50 = vector.shape_cast %49 : vector<1x8x32xf32> to vector<8x32xf32>
    %51 = vector.extract_strided_slice %10 {offsets = [1, 0, 0], sizes = [1, 8, 32], strides = [1, 1, 1]} : vector<2x8x32xf32> to vector<1x8x32xf32>
    %52 = vector.shape_cast %51 : vector<1x8x32xf32> to vector<8x32xf32>
    %53 = vector.shape_cast %50 : vector<8x32xf32> to vector<8x1x32xf32>
    %54 = vector.shape_cast %52 : vector<8x32xf32> to vector<1x8x32xf32>
    %55 = vector.broadcast %53 : vector<8x1x32xf32> to vector<8x8x32xf32>
    %56 = vector.broadcast %54 : vector<1x8x32xf32> to vector<8x8x32xf32>
    %57 = arith.addf %55, %56 : vector<8x8x32xf32>
    %58 = math.tanh %57 : vector<8x8x32xf32>
    %59 = vector.shape_cast %11 : vector<1x32xf32> to vector<1x1x32xf32>
    %60 = vector.broadcast %59 : vector<1x1x32xf32> to vector<8x8x32xf32>
    %61 = arith.mulf %58, %60 : vector<8x8x32xf32>
    %cst_23 = arith.constant dense<0.000000e+00> : vector<8x8xf32>
    %62 = vector.multi_reduction <add>, %61, %cst_23 [2] : vector<8x8x32xf32> to vector<8x8xf32>
    %c1_i32 = arith.constant 1 : i32
    %63 = arith.addi %0, %c1_i32 : i32
    %64 = arith.index_cast %63 : i32 to index
    %65 = memref.load %arg2[%64] : memref<2xi32, #tpu.memory_space<smem>>
    %66 = tpu.iota {dimensions = array<i32: 1>} : vector<8x8xi32>
    %67 = vector.broadcast %65 : i32 to vector<8x8xi32>
    %68 = arith.cmpi slt, %66, %67 : vector<8x8xi32>
    %cst_24 = arith.constant -1.000000e+06 : f32
    %69 = vector.broadcast %cst_24 : f32 to vector<8x8xf32>
    %70 = arith.select %68, %62, %69 : vector<8x8xi1>, vector<8x8xf32>
    %cst_25 = arith.constant dense<0xFF800000> : vector<8xf32>
    %71 = vector.multi_reduction <maximumf>, %70, %cst_25 [1] : vector<8x8xf32> to vector<8xf32>
    %72 = vector.shape_cast %71 : vector<8xf32> to vector<8x1xf32>
    %73 = vector.broadcast %72 : vector<8x1xf32> to vector<8x8xf32>
    %74 = arith.subf %70, %73 : vector<8x8xf32>
    %75 = math.exp %74 : vector<8x8xf32>
    %cst_26 = arith.constant dense<0.000000e+00> : vector<8xf32>
    %76 = vector.multi_reduction <add>, %75, %cst_26 [1] : vector<8x8xf32> to vector<8xf32>
    %77 = vector.shape_cast %76 : vector<8xf32> to vector<8x1xf32>
    %78 = vector.broadcast %77 : vector<8x1xf32> to vector<8x8xf32>
    %79 = arith.divf %75, %78 : vector<8x8xf32>
    %c1 = arith.constant 1 : index
    %c0_27 = arith.constant 0 : index
    %c0_28 = arith.constant 0 : index
    %80 = vector.load %arg5[%c1, %c0_27, %c0_28] : memref<2x8x32xf32, #tpu.memory_space<vmem>>, vector<1x8x32xf32>
    %81 = vector.shape_cast %80 : vector<1x8x32xf32> to vector<8x32xf32>
    %cst_29 = arith.constant dense<0.000000e+00> : vector<8x32xf32>
    %82 = tpu.matmul %79, %81, %cst_29 {dimension_numbers = #tpu.dot_dimension_numbers<[1], [0], [0], [1], [0, 0, 1, 1], [], []>} : vector<8x8xf32>, vector<8x32xf32>, vector<8x32xf32> -> vector<8x32xf32>
    %c1_30 = arith.constant 1 : index
    %c0_31 = arith.constant 0 : index
    %c0_32 = arith.constant 0 : index
    %83 = vector.load %arg9[%c1_30, %c0_31, %c0_32] : memref<2x8x32xf32, #tpu.memory_space<vmem>>, vector<1x8x32xf32>
    %84 = vector.shape_cast %83 : vector<1x8x32xf32> to vector<8x32xf32>
    %85 = vector.shape_cast %82 : vector<8x32xf32> to vector<1x8x32xf32>
    tpu.vector_store %arg9[%c1_30, %c0_31, %c0_32], %85 {strides = array<i32>} : memref<2x8x32xf32, #tpu.memory_space<vmem>>, vector<1x8x32xf32>,
    return
  }
  func.func @transform_0(%arg0: i32, %arg1: i32, %arg2: memref<2xi32, #tpu.memory_space<smem>>) -> (i32, i32, i32) {
    %c0_i32 = arith.constant 0 : i32
    %c0_i32_0 = arith.constant 0 : i32
    return %arg0, %arg1, %c0_i32 : i32, i32, i32
  }
  func.func @transform_1(%arg0: i32, %arg1: i32, %arg2: memref<2xi32, #tpu.memory_space<smem>>) -> (i32, i32, i32) {
    %c0_i32 = arith.constant 0 : i32
    %c0_i32_0 = arith.constant 0 : i32
    %c0_i32_1 = arith.constant 0 : i32
    return %arg0, %c0_i32, %c0_i32_0 : i32, i32, i32
  }
  func.func @transform_2(%arg0: i32, %arg1: i32, %arg2: memref<2xi32, #tpu.memory_space<smem>>) -> (i32, i32, i32) {
    %c0_i32 = arith.constant 0 : i32
    %c0_i32_0 = arith.constant 0 : i32
    %c0_i32_1 = arith.constant 0 : i32
    return %arg0, %c0_i32, %c0_i32_0 : i32, i32, i32
  }
  func.func @transform_3(%arg0: i32, %arg1: i32, %arg2: memref<2xi32, #tpu.memory_space<smem>>) -> (i32, i32) {
    %c0_i32 = arith.constant 0 : i32
    %c0_i32_0 = arith.constant 0 : i32
    %c0_i32_1 = arith.constant 0 : i32
    return %c0_i32, %c0_i32_0 : i32, i32
  }
  func.func @transform_4(%arg0: i32, %arg1: i32, %arg2: memref<2xi32, #tpu.memory_space<smem>>) -> (i32, i32) {
    %c0_i32 = arith.constant 0 : i32
    %c0_i32_0 = arith.constant 0 : i32
    %c0_i32_1 = arith.constant 0 : i32
    return %c0_i32, %c0_i32_0 : i32, i32
  }
  func.func @transform_5(%arg0: i32, %arg1: i32, %arg2: memref<2xi32, #tpu.memory_space<smem>>) -> (i32, i32) {
    %c0_i32 = arith.constant 0 : i32
    %c0_i32_0 = arith.constant 0 : i32
    %c0_i32_1 = arith.constant 0 : i32
    return %c0_i32, %c0_i32_0 : i32, i32
  }
  func.func @transform_6(%arg0: i32, %arg1: i32, %arg2: memref<2xi32, #tpu.memory_space<smem>>) -> (i32, i32, i32) {
    %c0_i32 = arith.constant 0 : i32
    %c0_i32_0 = arith.constant 0 : i32
    return %arg0, %arg1, %c0_i32 : i32, i32, i32
  }
}

</mosaic_0001>

<llo_original>
// kernel: additive_attention.1
$region0: #{additive_attention.1}
  #allocation0 [shape = 'u32[]', space=smem, size = 0x4, offset = 0x4, fixed_abs, tag = 'smem constant byte address 0x4 - core index']
  #allocation1 [shape = 'u32[144,128]{1,0:T(1,128)}', space=vmem, size = 0x12000, scoped, tag = 'internal scratch']
  #allocation2 [shape = 's32[1]{0}', space=sflag, size = 0x4, scoped, tag = 'scoped memory for additive_attention.1']
  #allocation3 [shape = 'u8[512]{0}', space=smem, size = 0x200, scoped, tag = 'prefetched SMEM operand 0']
  %s0 = inlined_call_operand.vmem [shape: s32[2], index: 0, kind: input, shape index: {}]
  %s1 = inlined_call_operand.vmem [shape: f32[2,8,16], index: 1, kind: input, shape index: {}]
  %s2 = inlined_call_operand.vmem [shape: f32[2,8,24], index: 2, kind: input, shape index: {}]
  %s3 = inlined_call_operand.vmem [shape: f32[2,8,32], index: 3, kind: input, shape index: {}]
  %s4 = inlined_call_operand.vmem [shape: f32[32,16], index: 4, kind: input, shape index: {}]
  %s5 = inlined_call_operand.vmem [shape: f32[32,24], index: 5, kind: input, shape index: {}]
  %s6 = inlined_call_operand.vmem [shape: f32[1,32], index: 6, kind: input, shape index: {}]
  %s7 = inlined_call_operand.hbm [shape: f32[2,8,32], index: 7, kind: output, shape index: {}]
  %s8 = sld [smem:[#allocation0]]
  $region34: #{additive_attention.1} parent=0
    _
  %s10 = ssub.s32 1, %s8
  %s11 = scalar_select 0, %s10, %s8
  %s12 = sshll.u32 %s0, 4
  %s13 = int_to_ptr.vmem [resolvable:$true] %s12
  %15 = dma.vmem_to_smem %s13, 16, [#allocation3], [#allocation2]
  %16 = dma.done [#allocation2], 16
  %17 = sfence
  $region1: #{additive_attention.1} parent=0
    #allocation4 [shape = 'u8[8192]{0}', space=vmem, size = 0x2000, scoped, tag = 'output window, operand 0, single buffered']
    #allocation5 [shape = 's32[1]{0}', space=sflag, size = 0x4, scoped, tag = 'scoped memory for additive_attention.1']
    %18 = vsyncpa [#allocation5], 0
    // Predicated region
    $region2: #{additive_attention.1} parent=1 // pred_check
      _
    $region3: #{additive_attention.1} parent=1 // pred_check_branch
      %20 = sbr.rel (0) target = $region5
    $region4: #{additive_attention.1} parent=1 // pred_region
      _
    $region5: #{additive_attention.1} parent=1 // pred_fallthru
      _
    // Predicated region
    $region6: #{additive_attention.1} parent=1 // pred_check
      _
    $region7: #{additive_attention.1} parent=1 // pred_check_branch
      %22 = sbr.rel (0) target = $region9
    $region8: #{additive_attention.1} parent=1 // pred_region
      _
    $region9: #{additive_attention.1} parent=1 // pred_fallthru
      _
    // Predicated region
    $region10: #{additive_attention.1} parent=1 // pred_check
      _
    $region11: #{additive_attention.1} parent=1 // pred_check_branch
      %24 = sbr.rel (0) target = $region13
    $region12: #{additive_attention.1} parent=1 // pred_region
      _
    $region13: #{additive_attention.1} parent=1 // pred_fallthru
      _
    // Predicated region
    $region14: #{additive_attention.1} parent=1 // pred_check
      _
    $region15: #{additive_attention.1} parent=1 // pred_check_branch
      %26 = sbr.rel (0) target = $region17
    $region16: #{additive_attention.1} parent=1 // pred_region
      _
    $region17: #{additive_attention.1} parent=1 // pred_fallthru
      _
    // Predicated region
    $region18: #{additive_attention.1} parent=1 // pred_check
      _
    $region19: #{additive_attention.1} parent=1 // pred_check_branch
      %28 = sbr.rel (0) target = $region21
    $region20: #{additive_attention.1} parent=1 // pred_region
      _
    $region21: #{additive_attention.1} parent=1 // pred_fallthru
      _
    // Predicated region
    $region22: #{additive_attention.1} parent=1 // pred_check
      _
    $region23: #{additive_attention.1} parent=1 // pred_check_branch
      %30 = sbr.rel (0) target = $region25
    $region24: #{additive_attention.1} parent=1 // pred_region
      _
    $region25: #{additive_attention.1} parent=1 // pred_fallthru
      _
    %s31 = smul.u32 0, 2
    %v32 = vld [vmem:[%s1] sm:$0xff]
    %v33 = vld [vmem:[%s1 + $0x8] sm:$0xff]
    %v34 = vld [vmem:[%s4] sm:$0xff]
    %v35 = vld [vmem:[%s4 + $0x8] sm:$0xff]
    %v36 = vld [vmem:[%s4 + $0x10] sm:$0xff]
    %v37 = vld [vmem:[%s4 + $0x18] sm:$0xff]
    %vm38 = vcmask 130048
    %v40 = vsel %vm38, %v32, 0
    %v43 = vsel %vm38, %v33, 0
    %v46 = vsel %vm38, %v34, 0
    %v49 = vsel %vm38, %v35, 0
    %v52 = vsel %vm38, %v36, 0
    %v55 = vsel %vm38, %v37, 0
    %57 = vmatprep.subr.mxu0 0.0
    %58 = vmatpush1.xpose.msra.mxu0 0.0
    %59 = vmatprep.subr.mxu0 0.0
    %60 = vmatpush1.xpose.msra.mxu0 0.0
    %61 = vmatprep.subr.mxu0 0.0
    %62 = vmatpush1.xpose.msra.mxu0 0.0
    %63 = vmatprep.subr.mxu0 0.0
    %64 = vmatpush1.xpose.msra.mxu0 0.0
    %65 = vmatprep.subr.mxu0 0.0
    %66 = vmatpush1.xpose.msra.mxu0 0.0
    %67 = vmatprep.subr.mxu0 0.0
    %68 = vmatpush1.xpose.msra.mxu0 0.0
    %69 = vmatprep.subr.mxu0 0.0
    %70 = vmatpush1.xpose.msra.mxu0 0.0
    %71 = vmatprep.subr.mxu0 0.0
    %72 = vmatpush1.xpose.msra.mxu0 0.0
    %73 = vmatprep.subr.mxu0 0.0
    %74 = vmatpush1.xpose.msra.mxu0 0.0
    %75 = vmatprep.subr.mxu0 0.0
    %76 = vmatpush1.xpose.msra.mxu0 0.0
    %77 = vmatprep.subr.mxu0 0.0
    %78 = vmatpush1.xpose.msra.mxu0 0.0
    %79 = vmatprep.subr.mxu0 0.0
    %80 = vmatpush1.xpose.msra.mxu0 0.0
    %81 = vmatprep.subr.mxu0 0.0
    %82 = vmatpush1.xpose.msra.mxu0 %v55
    %83 = vmatprep.subr.mxu0 0.0
    %84 = vmatpush1.xpose.msra.mxu0 %v52
    %85 = vmatprep.subr.mxu0 0.0
    %86 = vmatpush1.xpose.msra.mxu0 %v49
    %87 = vmatprep.subr.mxu0 0.0
    %88 = vmatpush1.xpose.msra.mxu0 %v46
    %89 = vmatprep.subr.mxu0 0.0
    %90 = vmatpush2.xpose.msra.mxu0 0.0
    %91 = vmatprep.subr.mxu0 0.0
    %92 = vmatpush2.xpose.msra.mxu0 0.0
    %93 = vmatprep.subr.mxu0 0.0
    %94 = vmatpush2.xpose.msra.mxu0 0.0
    %95 = vmatprep.subr.mxu0 0.0
    %96 = vmatpush2.xpose.msra.mxu0 0.0
    %97 = vmatprep.subr.mxu0 0.0
    %98 = vmatpush2.xpose.msra.mxu0 0.0
    %99 = vmatprep.subr.mxu0 0.0
    %100 = vmatpush2.xpose.msra.mxu0 0.0
    %101 = vmatprep.subr.mxu0 0.0
    %102 = vmatpush2.xpose.msra.mxu0 0.0
    %103 = vmatprep.subr.mxu0 0.0
    %104 = vmatpush2.xpose.msra.mxu0 0.0
    %105 = vmatprep.subr.mxu0 0.0
    %106 = vmatpush2.xpose.msra.mxu0 0.0
    %107 = vmatprep.subr.mxu0 0.0
    %108 = vmatpush2.xpose.msra.mxu0 0.0
    %109 = vmatprep.subr.mxu0 0.0
    %110 = vmatpush2.xpose.msra.mxu0 0.0
    %111 = vmatprep.subr.mxu0 0.0
    %112 = vmatpush2.xpose.msra.mxu0 0.0
    %113 = vmatprep.subr.mxu0 0.0
    %114 = vmatpush2.xpose.msra.mxu0 0.0
    %115 = vmatprep.subr.mxu0 0.0
    %116 = vmatpush2.xpose.msra.mxu0 0.0
    %117 = vmatprep.subr.mxu0 0.0
    %118 = vmatpush2.xpose.msra.mxu0 0.0
    %119 = vmatprep.subr.mxu0 0.0
    %120 = vmatpush2.xpose.msra.mxu0 0.0
    %121 = vmatprep.mubr.f32.mxu0 0.0
    %122 = vmatmul.mubr.f32.gmra.mxu0 %v40
    %v123 = vpop.f32.mrf.mxu0
    %v124 = vadd.f32 0.0, %v123
    %v125 = vpop.f32.mrf.mxu0
    %126 = vmatprep.mubr.f32.mxu0 0.0
    %127 = vmatmul.mubr.f32.gmra.mxu0 %v43
    %v128 = vpop.f32.mrf.mxu0
    %v129 = vadd.f32 0.0, %v128
    %v130 = vpop.f32.mrf.mxu0
    %131 = vdwg.mxu0
    %v132 = vld [vmem:[%s2] sm:$0xff]
    %v133 = vld [vmem:[%s2 + $0x8] sm:$0xff]
    %v134 = vld [vmem:[%s5] sm:$0xff]
    %v135 = vld [vmem:[%s5 + $0x8] sm:$0xff]
    %v136 = vld [vmem:[%s5 + $0x10] sm:$0xff]
    %v137 = vld [vmem:[%s5 + $0x18] sm:$0xff]
    %vm138 = vcmask 195584
    %v140 = vsel %vm138, %v132, 0
    %v143 = vsel %vm138, %v133, 0
    %v146 = vsel %vm138, %v134, 0
    %v149 = vsel %vm138, %v135, 0
    %v152 = vsel %vm138, %v136, 0
    %v155 = vsel %vm138, %v137, 0
    %157 = vmatprep.subr.mxu0 0.0
    %158 = vmatpush1.xpose.msra.mxu0 0.0
    %159 = vmatprep.subr.mxu0 0.0
    %160 = vmatpush1.xpose.msra.mxu0 0.0
    %161 = vmatprep.subr.mxu0 0.0
    %162 = vmatpush1.xpose.msra.mxu0 0.0
    %163 = vmatprep.subr.mxu0 0.0
    %164 = vmatpush1.xpose.msra.mxu0 0.0
    %165 = vmatprep.subr.mxu0 0.0
    %166 = vmatpush1.xpose.msra.mxu0 0.0
    %167 = vmatprep.subr.mxu0 0.0
    %168 = vmatpush1.xpose.msra.mxu0 0.0
    %169 = vmatprep.subr.mxu0 0.0
    %170 = vmatpush1.xpose.msra.mxu0 0.0
    %171 = vmatprep.subr.mxu0 0.0
    %172 = vmatpush1.xpose.msra.mxu0 0.0
    %173 = vmatprep.subr.mxu0 0.0
    %174 = vmatpush1.xpose.msra.mxu0 0.0
    %175 = vmatprep.subr.mxu0 0.0
    %176 = vmatpush1.xpose.msra.mxu0 0.0
    %177 = vmatprep.subr.mxu0 0.0
    %178 = vmatpush1.xpose.msra.mxu0 0.0
    %179 = vmatprep.subr.mxu0 0.0
    %180 = vmatpush1.xpose.msra.mxu0 0.0
    %181 = vmatprep.subr.mxu0 0.0
    %182 = vmatpush1.xpose.msra.mxu0 %v155
    %183 = vmatprep.subr.mxu0 0.0
    %184 = vmatpush1.xpose.msra.mxu0 %v152
    %185 = vmatprep.subr.mxu0 0.0
    %186 = vmatpush1.xpose.msra.mxu0 %v149
    %187 = vmatprep.subr.mxu0 0.0
    %188 = vmatpush1.xpose.msra.mxu0 %v146
    %189 = vmatprep.subr.mxu0 0.0
    %190 = vmatpush2.xpose.msra.mxu0 0.0
    %191 = vmatprep.subr.mxu0 0.0
    %192 = vmatpush2.xpose.msra.mxu0 0.0
    %193 = vmatprep.subr.mxu0 0.0
    %194 = vmatpush2.xpose.msra.mxu0 0.0
    %195 = vmatprep.subr.mxu0 0.0
    %196 = vmatpush2.xpose.msra.mxu0 0.0
    %197 = vmatprep.subr.mxu0 0.0
    %198 = vmatpush2.xpose.msra.mxu0 0.0
    %199 = vmatprep.subr.mxu0 0.0
    %200 = vmatpush2.xpose.msra.mxu0 0.0
    %201 = vmatprep.subr.mxu0 0.0
    %202 = vmatpush2.xpose.msra.mxu0 0.0
    %203 = vmatprep.subr.mxu0 0.0
    %204 = vmatpush2.xpose.msra.mxu0 0.0
    %205 = vmatprep.subr.mxu0 0.0
    %206 = vmatpush2.xpose.msra.mxu0 0.0
    %207 = vmatprep.subr.mxu0 0.0
    %208 = vmatpush2.xpose.msra.mxu0 0.0
    %209 = vmatprep.subr.mxu0 0.0
    %210 = vmatpush2.xpose.msra.mxu0 0.0
    %211 = vmatprep.subr.mxu0 0.0
    %212 = vmatpush2.xpose.msra.mxu0 0.0
    %213 = vmatprep.subr.mxu0 0.0
    %214 = vmatpush2.xpose.msra.mxu0 0.0
    %215 = vmatprep.subr.mxu0 0.0
    %216 = vmatpush2.xpose.msra.mxu0 0.0
    %217 = vmatprep.subr.mxu0 0.0
    %218 = vmatpush2.xpose.msra.mxu0 0.0
    %219 = vmatprep.subr.mxu0 0.0
    %220 = vmatpush2.xpose.msra.mxu0 0.0
    %221 = vmatprep.mubr.f32.mxu0 0.0
    %222 = vmatmul.mubr.f32.gmra.mxu0 %v140
    %v223 = vpop.f32.mrf.mxu0
    %v224 = vadd.f32 0.0, %v223
    %v225 = vpop.f32.mrf.mxu0
    %226 = vmatprep.mubr.f32.mxu0 0.0
    %227 = vmatmul.mubr.f32.gmra.mxu0 %v143
    %v228 = vpop.f32.mrf.mxu0
    %v229 = vadd.f32 0.0, %v228
    %v230 = vpop.f32.mrf.mxu0
    %231 = vdwg.mxu0
    %v232 = vld [vmem:[%s6] sm:$0x1]
    %v234 = vcombine.high %v124, %v124
    %v236 = vunpack.c.l.s4 1966171168
    %v237 = vunpack.c.0.s8 %v236
    %v238 = vlaneseq
    %v239 = vshrl.u32 %v238, 7
    %v240 = vsub.s32 %v237, %v239
    %v241 = vrot.slane %v124, %v240
    %v243 = vunpack.c.l.s4 1966171168
    %v244 = vunpack.c.0.s8 %v243
    %v245 = vlaneseq
    %v246 = vshrl.u32 %v245, 7
    %v247 = vsub.s32 %v244, %v246
    %v248 = vrot.slane %v234, %v247
    %v249 = vcombine.high %v241, %v241
    %v250 = vcombine.high %v248, %v248
    %v252 = vunpack.c.l.s4 1966171168
    %v253 = vunpack.c.0.s8 %v252
    %v254 = vlaneseq
    %v255 = vshrl.u32 %v254, 7
    %v256 = vsub.s32 %v253, %v255
    %v257 = vrot.slane %v241, %v256
    %v259 = vunpack.c.l.s4 1966171168
    %v260 = vunpack.c.0.s8 %v259
    %v261 = vlaneseq
    %v262 = vshrl.u32 %v261, 7
    %v263 = vsub.s32 %v260, %v262
    %v264 = vrot.slane %v248, %v263
    %v266 = vunpack.c.l.s4 1966171168
    %v267 = vunpack.c.0.s8 %v266
    %v268 = vlaneseq
    %v269 = vshrl.u32 %v268, 7
    %v270 = vsub.s32 %v267, %v269
    %v271 = vrot.slane %v249, %v270
    %v273 = vunpack.c.l.s4 1966171168
    %v274 = vunpack.c.0.s8 %v273
    %v275 = vlaneseq
    %v276 = vshrl.u32 %v275, 7
    %v277 = vsub.s32 %v274, %v276
    %v278 = vrot.slane %v250, %v277
    %v279 = vcombine.high %v257, %v257
    %v280 = vcombine.high %v264, %v264
    %v281 = vcombine.high %v271, %v271
    %v282 = vcombine.high %v278, %v278
    %v283 = vlaneseq
    %v284 = vshrl.u32 %v283, 7
    %v285 = vsub.s32 0, %v284
    %v286 = vrot.slane %v257, %v285
    %v287 = vlaneseq
    %v288 = vshrl.u32 %v287, 7
    %v289 = vsub.s32 0, %v288
    %v290 = vrot.slane %v271, %v289
    %v291 = vlaneseq
    %v292 = vshrl.u32 %v291, 7
    %v293 = vsub.s32 0, %v292
    %v294 = vrot.slane %v279, %v293
    %v295 = vlaneseq
    %v296 = vshrl.u32 %v295, 7
    %v297 = vsub.s32 0, %v296
    %v298 = vrot.slane %v281, %v297
    %v299 = vlaneseq
    %v300 = vshrl.u32 %v299, 7
    %v301 = vsub.s32 0, %v300
    %v302 = vrot.slane %v264, %v301
    %v303 = vlaneseq
    %v304 = vshrl.u32 %v303, 7
    %v305 = vsub.s32 0, %v304
    %v306 = vrot.slane %v278, %v305
    %v307 = vlaneseq
    %v308 = vshrl.u32 %v307, 7
    %v309 = vsub.s32 0, %v308
    %v310 = vrot.slane %v280, %v309
    %v311 = vlaneseq
    %v312 = vshrl.u32 %v311, 7
    %v313 = vsub.s32 0, %v312
    %v314 = vrot.slane %v282, %v313
    %v323 = vadd.f32 %v286, %v224
    %v324 = vadd.f32 %v290, %v224
    %v325 = vadd.f32 %v294, %v224
    %v326 = vadd.f32 %v298, %v224
    %v327 = vadd.f32 %v302, %v224
    %v328 = vadd.f32 %v306, %v224
    %v329 = vadd.f32 %v310, %v224
    %v330 = vadd.f32 %v314, %v224
    %v331 = vtanh.pop %v323
    %v332 = vtanh.pop %v324
    %v333 = vtanh.pop %v325
    %v334 = vtanh.pop %v326
    %v335 = vtanh.pop %v327
    %v336 = vtanh.pop %v328
    %v337 = vtanh.pop %v329
    %v338 = vtanh.pop %v330
    %v340 = vlaneseq
    %v341 = vshrl.u32 %v340, 7
    %v342 = vsub.s32 0, %v341
    %v343 = vrot.slane %v232, %v342
    %v345 = vmul.f32 %v331, %v343
    %v346 = vmul.f32 %v332, %v343
    %v347 = vmul.f32 %v333, %v343
    %v348 = vmul.f32 %v334, %v343
    %v349 = vmul.f32 %v335, %v343
    %v350 = vmul.f32 %v336, %v343
    %v351 = vmul.f32 %v337, %v343
    %v352 = vmul.f32 %v338, %v343
    %vm353 = vcmask 261120
    %v354 = vsel %vm353, %v345, 0.0
    %355 = vadd.xlane.f32.xlu0 %v354
    %v356 = vpop.xlane.xlu0 %355
    %v357 = vsel %vm353, %v346, 0.0
    %358 = vadd.xlane.f32.xlu0 %v357
    %v359 = vpop.xlane.xlu0 %358
    %v360 = vsel %vm353, %v347, 0.0
    %361 = vadd.xlane.f32.xlu0 %v360
    %v362 = vpop.xlane.xlu0 %361
    %v363 = vsel %vm353, %v348, 0.0
    %364 = vadd.xlane.f32.xlu0 %v363
    %v365 = vpop.xlane.xlu0 %364
    %v366 = vsel %vm353, %v349, 0.0
    %367 = vadd.xlane.f32.xlu0 %v366
    %v368 = vpop.xlane.xlu0 %367
    %v369 = vsel %vm353, %v350, 0.0
    %370 = vadd.xlane.f32.xlu0 %v369
    %v371 = vpop.xlane.xlu0 %370
    %v372 = vsel %vm353, %v351, 0.0
    %373 = vadd.xlane.f32.xlu0 %v372
    %v374 = vpop.xlane.xlu0 %373
    %v375 = vsel %vm353, %v352, 0.0
    %376 = vadd.xlane.f32.xlu0 %v375
    %v377 = vpop.xlane.xlu0 %376
    %s378 = sld [smem:[#allocation3 + %s31]]
    %v379 = vlaneseq
    %v380 = vand.u32 %v379, 127
    %v381 = vstv %s378
    %vm382 = vcmp.lt.s32.totalorder %v380, %v381
    %v391 = vlaneseq
    %v392 = vshrl.u32 %v391, 7
    %v393 = vsub.s32 %v380, %v392
    %v394 = vrot.slane %v356, %v393
    %v395 = vlaneseq
    %v396 = vshrl.u32 %v395, 7
    %v397 = vsub.s32 %v380, %v396
    %v398 = vrot.slane %v359, %v397
    %v399 = vlaneseq
    %v400 = vshrl.u32 %v399, 7
    %v401 = vsub.s32 %v380, %v400
    %v402 = vrot.slane %v362, %v401
    %v403 = vlaneseq
    %v404 = vshrl.u32 %v403, 7
    %v405 = vsub.s32 %v380, %v404
    %v406 = vrot.slane %v365, %v405
    %v407 = vlaneseq
    %v408 = vshrl.u32 %v407, 7
    %v409 = vsub.s32 %v380, %v408
    %v410 = vrot.slane %v368, %v409
    %v411 = vlaneseq
    %v412 = vshrl.u32 %v411, 7
    %v413 = vsub.s32 %v380, %v412
    %v414 = vrot.slane %v371, %v413
    %v415 = vlaneseq
    %v416 = vshrl.u32 %v415, 7
    %v417 = vsub.s32 %v380, %v416
    %v418 = vrot.slane %v374, %v417
    %v419 = vlaneseq
    %v420 = vshrl.u32 %v419, 7
    %v421 = vsub.s32 %v380, %v420
    %v422 = vrot.slane %v377, %v421
    %vm423 = vcmask 1041409
    %v424 = vsel %vm423, %v398, %v394
    %vm425 = vcmask 1042434
    %v426 = vsel %vm425, %v402, %v424
    %vm427 = vcmask 1043459
    %v428 = vsel %vm427, %v406, %v426
    %vm429 = vcmask 1044484
    %v430 = vsel %vm429, %v410, %v428
    %vm431 = vcmask 1045509
    %v432 = vsel %vm431, %v414, %v430
    %vm433 = vcmask 1046534
    %v434 = vsel %vm433, %v418, %v432
    %vm435 = vcmask 1047559
    %v436 = vsel %vm435, %v422, %v434
    %v438 = vsel %vm382, %v436, -1000000.0
    %vm439 = vcmask 64512
    %v440 = vsel %vm439, %v438, -inf
    %441 = vmax.xlane.f32.xlu0 %v440
    %v442 = vpop.xlane.xlu0 %441
    %v443 = vsub.f32 %v438, %v442
    %v444 = vmul.f32 %v443, 1.442695
    %v445 = vpow.pop %v444
    %v446 = vsel %vm439, %v445, 0.0
    %447 = vadd.xlane.f32.xlu0 %v446
    %v448 = vpop.xlane.xlu0 %447
    %v449 = vrcp.pop %v448
    %v450 = vmul.f32 %v445, %v449
    %v451 = vld [vmem:[%s3] sm:$0xff]
    %v453 = vsel %vm439, %v450, 0
    %455 = vmatprep.subr.mxu0 0.0
    %456 = vmatpush1.msra.mxu0 0.0
    %457 = vmatprep.subr.mxu0 0.0
    %458 = vmatpush1.msra.mxu0 0.0
    %459 = vmatprep.subr.mxu0 0.0
    %460 = vmatpush1.msra.mxu0 0.0
    %461 = vmatprep.subr.mxu0 0.0
    %462 = vmatpush1.msra.mxu0 0.0
    %463 = vmatprep.subr.mxu0 0.0
    %464 = vmatpush1.msra.mxu0 0.0
    %465 = vmatprep.subr.mxu0 0.0
    %466 = vmatpush1.msra.mxu0 0.0
    %467 = vmatprep.subr.mxu0 0.0
    %468 = vmatpush1.msra.mxu0 0.0
    %469 = vmatprep.subr.mxu0 0.0
    %470 = vmatpush1.msra.mxu0 0.0
    %471 = vmatprep.subr.mxu0 0.0
    %472 = vmatpush1.msra.mxu0 0.0
    %473 = vmatprep.subr.mxu0 0.0
    %474 = vmatpush1.msra.mxu0 0.0
    %475 = vmatprep.subr.mxu0 0.0
    %476 = vmatpush1.msra.mxu0 0.0
    %477 = vmatprep.subr.mxu0 0.0
    %478 = vmatpush1.msra.mxu0 0.0
    %479 = vmatprep.subr.mxu0 0.0
    %480 = vmatpush1.msra.mxu0 0.0
    %481 = vmatprep.subr.mxu0 0.0
    %482 = vmatpush1.msra.mxu0 0.0
    %483 = vmatprep.subr.mxu0 0.0
    %484 = vmatpush1.msra.mxu0 0.0
    %485 = vmatprep.subr.mxu0 0.0
    %486 = vmatpush1.msra.mxu0 %v451
    %487 = vmatprep.subr.mxu0 0.0
    %488 = vmatpush2.msra.mxu0 0.0
    %489 = vmatprep.subr.mxu0 0.0
    %490 = vmatpush2.msra.mxu0 0.0
    %491 = vmatprep.subr.mxu0 0.0
    %492 = vmatpush2.msra.mxu0 0.0
    %493 = vmatprep.subr.mxu0 0.0
    %494 = vmatpush2.msra.mxu0 0.0
    %495 = vmatprep.subr.mxu0 0.0
    %496 = vmatpush2.msra.mxu0 0.0
    %497 = vmatprep.subr.mxu0 0.0
    %498 = vmatpush2.msra.mxu0 0.0
    %499 = vmatprep.subr.mxu0 0.0
    %500 = vmatpush2.msra.mxu0 0.0
    %501 = vmatprep.subr.mxu0 0.0
    %502 = vmatpush2.msra.mxu0 0.0
    %503 = vmatprep.subr.mxu0 0.0
    %504 = vmatpush2.msra.mxu0 0.0
    %505 = vmatprep.subr.mxu0 0.0
    %506 = vmatpush2.msra.mxu0 0.0
    %507 = vmatprep.subr.mxu0 0.0
    %508 = vmatpush2.msra.mxu0 0.0
    %509 = vmatprep.subr.mxu0 0.0
    %510 = vmatpush2.msra.mxu0 0.0
    %511 = vmatprep.subr.mxu0 0.0
    %512 = vmatpush2.msra.mxu0 0.0
    %513 = vmatprep.subr.mxu0 0.0
    %514 = vmatpush2.msra.mxu0 0.0
    %515 = vmatprep.subr.mxu0 0.0
    %516 = vmatpush2.msra.mxu0 0.0
    %517 = vmatprep.subr.mxu0 0.0
    %518 = vmatpush2.msra.mxu0 0.0
    %519 = vmatprep.mubr.f32.mxu0 0.0
    %520 = vmatmul.mubr.f32.gmra.mxu0 %v453
    %v521 = vpop.f32.mrf.mxu0
    %v522 = vadd.f32 0.0, %v521
    %v523 = vpop.f32.mrf.mxu0
    %524 = vdwg.mxu0
    %525 = vst.msk [vmem:[#allocation4] sm:$0xff] %vm353, %v522
    %v527 = vcombine.high %v129, %v129
    %v529 = vunpack.c.l.s4 1966171168
    %v530 = vunpack.c.0.s8 %v529
    %v531 = vlaneseq
    %v532 = vshrl.u32 %v531, 7
    %v533 = vsub.s32 %v530, %v532
    %v534 = vrot.slane %v129, %v533
    %v536 = vunpack.c.l.s4 1966171168
    %v537 = vunpack.c.0.s8 %v536
    %v538 = vlaneseq
    %v539 = vshrl.u32 %v538, 7
    %v540 = vsub.s32 %v537, %v539
    %v541 = vrot.slane %v527, %v540
    %v542 = vcombine.high %v534, %v534
    %v543 = vcombine.high %v541, %v541
    %v545 = vunpack.c.l.s4 1966171168
    %v546 = vunpack.c.0.s8 %v545
    %v547 = vlaneseq
    %v548 = vshrl.u32 %v547, 7
    %v549 = vsub.s32 %v546, %v548
    %v550 = vrot.slane %v534, %v549
    %v552 = vunpack.c.l.s4 1966171168
    %v553 = vunpack.c.0.s8 %v552
    %v554 = vlaneseq
    %v555 = vshrl.u32 %v554, 7
    %v556 = vsub.s32 %v553, %v555
    %v557 = vrot.slane %v541, %v556
    %v559 = vunpack.c.l.s4 1966171168
    %v560 = vunpack.c.0.s8 %v559
    %v561 = vlaneseq
    %v562 = vshrl.u32 %v561, 7
    %v563 = vsub.s32 %v560, %v562
    %v564 = vrot.slane %v542, %v563
    %v566 = vunpack.c.l.s4 1966171168
    %v567 = vunpack.c.0.s8 %v566
    %v568 = vlaneseq
    %v569 = vshrl.u32 %v568, 7
    %v570 = vsub.s32 %v567, %v569
    %v571 = vrot.slane %v543, %v570
    %v572 = vcombine.high %v550, %v550
    %v573 = vcombine.high %v557, %v557
    %v574 = vcombine.high %v564, %v564
    %v575 = vcombine.high %v571, %v571
    %v576 = vlaneseq
    %v577 = vshrl.u32 %v576, 7
    %v578 = vsub.s32 0, %v577
    %v579 = vrot.slane %v550, %v578
    %v580 = vlaneseq
    %v581 = vshrl.u32 %v580, 7
    %v582 = vsub.s32 0, %v581
    %v583 = vrot.slane %v564, %v582
    %v584 = vlaneseq
    %v585 = vshrl.u32 %v584, 7
    %v586 = vsub.s32 0, %v585
    %v587 = vrot.slane %v572, %v586
    %v588 = vlaneseq
    %v589 = vshrl.u32 %v588, 7
    %v590 = vsub.s32 0, %v589
    %v591 = vrot.slane %v574, %v590
    %v592 = vlaneseq
    %v593 = vshrl.u32 %v592, 7
    %v594 = vsub.s32 0, %v593
    %v595 = vrot.slane %v557, %v594
    %v596 = vlaneseq
    %v597 = vshrl.u32 %v596, 7
    %v598 = vsub.s32 0, %v597
    %v599 = vrot.slane %v571, %v598
    %v600 = vlaneseq
    %v601 = vshrl.u32 %v600, 7
    %v602 = vsub.s32 0, %v601
    %v603 = vrot.slane %v573, %v602
    %v604 = vlaneseq
    %v605 = vshrl.u32 %v604, 7
    %v606 = vsub.s32 0, %v605
    %v607 = vrot.slane %v575, %v606
    %v616 = vadd.f32 %v579, %v229
    %v617 = vadd.f32 %v583, %v229
    %v618 = vadd.f32 %v587, %v229
    %v619 = vadd.f32 %v591, %v229
    %v620 = vadd.f32 %v595, %v229
    %v621 = vadd.f32 %v599, %v229
    %v622 = vadd.f32 %v603, %v229
    %v623 = vadd.f32 %v607, %v229
    %v624 = vtanh.pop %v616
    %v625 = vtanh.pop %v617
    %v626 = vtanh.pop %v618
    %v627 = vtanh.pop %v619
    %v628 = vtanh.pop %v620
    %v629 = vtanh.pop %v621
    %v630 = vtanh.pop %v622
    %v631 = vtanh.pop %v623
    %v632 = vmul.f32 %v624, %v343
    %v633 = vmul.f32 %v625, %v343
    %v634 = vmul.f32 %v626, %v343
    %v635 = vmul.f32 %v627, %v343
    %v636 = vmul.f32 %v628, %v343
    %v637 = vmul.f32 %v629, %v343
    %v638 = vmul.f32 %v630, %v343
    %v639 = vmul.f32 %v631, %v343
    %v640 = vsel %vm353, %v632, 0.0
    %641 = vadd.xlane.f32.xlu0 %v640
    %v642 = vpop.xlane.xlu0 %641
    %v643 = vsel %vm353, %v633, 0.0
    %644 = vadd.xlane.f32.xlu0 %v643
    %v645 = vpop.xlane.xlu0 %644
    %v646 = vsel %vm353, %v634, 0.0
    %647 = vadd.xlane.f32.xlu0 %v646
    %v648 = vpop.xlane.xlu0 %647
    %v649 = vsel %vm353, %v635, 0.0
    %650 = vadd.xlane.f32.xlu0 %v649
    %v651 = vpop.xlane.xlu0 %650
    %v652 = vsel %vm353, %v636, 0.0
    %653 = vadd.xlane.f32.xlu0 %v652
    %v654 = vpop.xlane.xlu0 %653
    %v655 = vsel %vm353, %v637, 0.0
    %656 = vadd.xlane.f32.xlu0 %v655
    %v657 = vpop.xlane.xlu0 %656
    %v658 = vsel %vm353, %v638, 0.0
    %659 = vadd.xlane.f32.xlu0 %v658
    %v660 = vpop.xlane.xlu0 %659
    %v661 = vsel %vm353, %v639, 0.0
    %662 = vadd.xlane.f32.xlu0 %v661
    %v663 = vpop.xlane.xlu0 %662
    %s664 = sadd.s32 %s31, 1
    %s665 = sld [smem:[#allocation3 + %s664]]
    %v666 = vstv %s665
    %vm667 = vcmp.lt.s32.totalorder %v380, %v666
    %v676 = vlaneseq
    %v677 = vshrl.u32 %v676, 7
    %v678 = vsub.s32 %v380, %v677
    %v679 = vrot.slane %v642, %v678
    %v680 = vlaneseq
    %v681 = vshrl.u32 %v680, 7
    %v682 = vsub.s32 %v380, %v681
    %v683 = vrot.slane %v645, %v682
    %v684 = vlaneseq
    %v685 = vshrl.u32 %v684, 7
    %v686 = vsub.s32 %v380, %v685
    %v687 = vrot.slane %v648, %v686
    %v688 = vlaneseq
    %v689 = vshrl.u32 %v688, 7
    %v690 = vsub.s32 %v380, %v689
    %v691 = vrot.slane %v651, %v690
    %v692 = vlaneseq
    %v693 = vshrl.u32 %v692, 7
    %v694 = vsub.s32 %v380, %v693
    %v695 = vrot.slane %v654, %v694
    %v696 = vlaneseq
    %v697 = vshrl.u32 %v696, 7
    %v698 = vsub.s32 %v380, %v697
    %v699 = vrot.slane %v657, %v698
    %v700 = vlaneseq
    %v701 = vshrl.u32 %v700, 7
    %v702 = vsub.s32 %v380, %v701
    %v703 = vrot.slane %v660, %v702
    %v704 = vlaneseq
    %v705 = vshrl.u32 %v704, 7
    %v706 = vsub.s32 %v380, %v705
    %v707 = vrot.slane %v663, %v706
    %v708 = vsel %vm423, %v683, %v679
    %v709 = vsel %vm425, %v687, %v708
    %v710 = vsel %vm427, %v691, %v709
    %v711 = vsel %vm429, %v695, %v710
    %v712 = vsel %vm431, %v699, %v711
    %v713 = vsel %vm433, %v703, %v712
    %v714 = vsel %vm435, %v707, %v713
    %v716 = vsel %vm667, %v714, -1000000.0
    %v717 = vsel %vm439, %v716, -inf
    %718 = vmax.xlane.f32.xlu0 %v717
    %v719 = vpop.xlane.xlu0 %718
    %v720 = vsub.f32 %v716, %v719
    %v721 = vmul.f32 %v720, 1.442695
    %v722 = vpow.pop %v721
    %v723 = vsel %vm439, %v722, 0.0
    %724 = vadd.xlane.f32.xlu0 %v723
    %v725 = vpop.xlane.xlu0 %724
    %v726 = vrcp.pop %v725
    %v727 = vmul.f32 %v722, %v726
    %s728 = scalar_lea.vmem %s3, 8
    %v729 = vld [vmem:[%s728] sm:$0xff]
    %v731 = vsel %vm439, %v727, 0
    %733 = vmatprep.subr.mxu0 0.0
    %734 = vmatpush1.msra.mxu0 0.0
    %735 = vmatprep.subr.mxu0 0.0
    %736 = vmatpush1.msra.mxu0 0.0
    %737 = vmatprep.subr.mxu0 0.0
    %738 = vmatpush1.msra.mxu0 0.0
    %739 = vmatprep.subr.mxu0 0.0
    %740 = vmatpush1.msra.mxu0 0.0
    %741 = vmatprep.subr.mxu0 0.0
    %742 = vmatpush1.msra.mxu0 0.0
    %743 = vmatprep.subr.mxu0 0.0
    %744 = vmatpush1.msra.mxu0 0.0
    %745 = vmatprep.subr.mxu0 0.0
    %746 = vmatpush1.msra.mxu0 0.0
    %747 = vmatprep.subr.mxu0 0.0
    %748 = vmatpush1.msra.mxu0 0.0
    %749 = vmatprep.subr.mxu0 0.0
    %750 = vmatpush1.msra.mxu0 0.0
    %751 = vmatprep.subr.mxu0 0.0
    %752 = vmatpush1.msra.mxu0 0.0
    %753 = vmatprep.subr.mxu0 0.0
    %754 = vmatpush1.msra.mxu0 0.0
    %755 = vmatprep.subr.mxu0 0.0
    %756 = vmatpush1.msra.mxu0 0.0
    %757 = vmatprep.subr.mxu0 0.0
    %758 = vmatpush1.msra.mxu0 0.0
    %759 = vmatprep.subr.mxu0 0.0
    %760 = vmatpush1.msra.mxu0 0.0
    %761 = vmatprep.subr.mxu0 0.0
    %762 = vmatpush1.msra.mxu0 0.0
    %763 = vmatprep.subr.mxu0 0.0
    %764 = vmatpush1.msra.mxu0 %v729
    %765 = vmatprep.subr.mxu0 0.0
    %766 = vmatpush2.msra.mxu0 0.0
    %767 = vmatprep.subr.mxu0 0.0
    %768 = vmatpush2.msra.mxu0 0.0
    %769 = vmatprep.subr.mxu0 0.0
    %770 = vmatpush2.msra.mxu0 0.0
    %771 = vmatprep.subr.mxu0 0.0
    %772 = vmatpush2.msra.mxu0 0.0
    %773 = vmatprep.subr.mxu0 0.0
    %774 = vmatpush2.msra.mxu0 0.0
    %775 = vmatprep.subr.mxu0 0.0
    %776 = vmatpush2.msra.mxu0 0.0
    %777 = vmatprep.subr.mxu0 0.0
    %778 = vmatpush2.msra.mxu0 0.0
    %779 = vmatprep.subr.mxu0 0.0
    %780 = vmatpush2.msra.mxu0 0.0
    %781 = vmatprep.subr.mxu0 0.0
    %782 = vmatpush2.msra.mxu0 0.0
    %783 = vmatprep.subr.mxu0 0.0
    %784 = vmatpush2.msra.mxu0 0.0
    %785 = vmatprep.subr.mxu0 0.0
    %786 = vmatpush2.msra.mxu0 0.0
    %787 = vmatprep.subr.mxu0 0.0
    %788 = vmatpush2.msra.mxu0 0.0
    %789 = vmatprep.subr.mxu0 0.0
    %790 = vmatpush2.msra.mxu0 0.0
    %791 = vmatprep.subr.mxu0 0.0
    %792 = vmatpush2.msra.mxu0 0.0
    %793 = vmatprep.subr.mxu0 0.0
    %794 = vmatpush2.msra.mxu0 0.0
    %795 = vmatprep.subr.mxu0 0.0
    %796 = vmatpush2.msra.mxu0 0.0
    %797 = vmatprep.mubr.f32.mxu0 0.0
    %798 = vmatmul.mubr.f32.gmra.mxu0 %v731
    %v799 = vpop.f32.mrf.mxu0
    %v800 = vadd.f32 0.0, %v799
    %v801 = vpop.f32.mrf.mxu0
    %802 = vdwg.mxu0
    %s803 = scalar_lea.vmem [#allocation4], 8
    %804 = vst.msk [vmem:[%s803] sm:$0xff] %vm353, %v800
    // Predicated region
    $region26: #{additive_attention.1} parent=1 // pred_check
      _
    $region27: #{additive_attention.1} parent=1 // pred_check_branch
      %806 = sbr.rel (0) target = $region29
    $region28: #{additive_attention.1} parent=1 // pred_region
      %s808 = ssub.s32 256, 256
      %809 = vsyncadd [#allocation5], %s808
      %s810 = sshll.u32 [#allocation4], 4
      %s811 = int_to_ptr.vmem [resolvable:$true] %s810
      %816 = dma.vmem_to_hbm [thread:$0]  %s811, 256, %s7, [#allocation5], 128, 128, 8
    $region29: #{additive_attention.1} parent=1 // pred_fallthru
      _
    // Predicated region
    $region30: #{additive_attention.1} parent=1 // pred_check
      _
    $region31: #{additive_attention.1} parent=1 // pred_check_branch
      %818 = sbr.rel (0) target = $region33
    $region32: #{additive_attention.1} parent=1 // pred_region
      %819 = dma.done [#allocation5], 256
    $region33: #{additive_attention.1} parent=1 // pred_fallthru
      _
    %820 = vsyncpa [#allocation5], 1

</llo_original>
